<compile_context>
chip_gen: v6e
topology: v6e:2x2x1
jax: 0.10.0
libtpu: 0.0.40
codegen_flags: <defaults>
</compile_context>

<pallas_src>
import functools
import math

import jax
import jax.numpy as jnp
from jax.experimental import pallas as pl
from jax.experimental.pallas import tpu as pltpu

BN_EPS = 1e-5  # nn.BatchNorm2d default


# --------------------------- roll direction probe --------------------------- #

@functools.lru_cache(maxsize=None)
def _roll_sign():
    """Probe pltpu.roll's rotation convention once (tiny eager kernel): returns -1 if
    pltpu.roll matches jnp.roll (result[i] = x[i - shift]), else +1."""
    def probe(x_ref, o_ref):
        o_ref[...] = pltpu.roll(x_ref[...], 1, 1)

    x = jnp.broadcast_to(jax.lax.iota(jnp.int32, 128)[None, :], (8, 128))
    out = pl.pallas_call(
        probe, out_shape=jax.ShapeDtypeStruct((8, 128), jnp.int32))(x)
    return -1 if int(out[0, 1]) == 0 else 1


# ------------------------------ fused kernel -------------------------------- #

def _basic_block_kernel(x_ref, wf_ref, ws_ref, b_ref, m_ref, *rest,
                        W, Cin, Cout, stride, ds_mode, roll_sign):
    """One batch of B images per grid step, flattened onto the lane axis.
    x_ref: (Cin, L) compute-dtype, L = B*H*W; o_ref: (Cout, L // stride**2)."""
    if stride != 1:
        sel_ref, o_ref, tap_ref = rest
    else:
        sel_ref = None
        o_ref, tap_ref = rest

    L = x_ref.shape[1]
    cdt = x_ref.dtype
    x_c = x_ref[...]                                            # (Cin, L) cdt

    # conv1 (1x1, BN1 folded) -- fused with the 1x1 downsample conv along M when present.
    y = jnp.dot(wf_ref[...], x_c, preferred_element_type=jnp.float32)   # (Cfirst, L) f32
    h1 = jnp.maximum(y[:Cout] + b_ref[:, 0:1], 0.0)                     # (Cout, L) f32

    if ds_mode == "1x1":
        res = y[Cout:] + b_ref[:, 2:3]                                  # downsample branch
    elif ds_mode is None:
        res = x_c.astype(jnp.float32)                                   # identity residual
    else:
        res = None                                                      # folded into conv2 dot

    def write_taps(v_f32, row0, C):
        """In-register im2col: 9 lane-rolls + boundary masks, written into the VMEM
        tap scratch (rows [row0, row0 + 9*C))."""
        i = 0
        for dy in (-1, 0, 1):
            for dx in (-1, 0, 1):
                s = dy * W + dx
                if s == 0:
                    t = v_f32                                   # center tap: mask is all-ones
                else:
                    t = pltpu.roll(v_f32, (roll_sign * s) % L, 1) * m_ref[i:i + 1, :]
                tap_ref[row0 + i * C: row0 + (i + 1) * C, :] = t.astype(cdt)
                i += 1

    write_taps(h1, 0, Cout)
    if ds_mode == "3x3":
        write_taps(x_c.astype(jnp.float32), 9 * Cout, Cin)

    # conv2 (3x3, BN2 folded) -- and, for stride!=1, the 3x3 downsample fused along K.
    out = jnp.dot(ws_ref[...], tap_ref[...],
                  preferred_element_type=jnp.float32) + b_ref[:, 1:2]    # (Cout, L) f32
    if res is not None:
        out = out + res
    out = jnp.maximum(out, 0.0)

    if stride != 1:
        # in-kernel stride subsample: 0/1 selection matmul -> lane-compact strided output.
        out = jnp.dot(out, sel_ref[...], preferred_element_type=jnp.float32)

    o_ref[...] = out.astype(o_ref.dtype)


# ------------------------------- glue (JAX) --------------------------------- #

def _fold_bn(bn):
    """Fold inference-mode BatchNorm into per-channel scale/bias."""
    scale = bn["gamma"] / jnp.sqrt(bn["var"] + BN_EPS)
    bias = bn["beta"] - bn["mean"] * scale
    return scale, bias


def _choose_batch(N, HW, Cout, Cin, stride, itemsize, requested):
    if requested is not None:
        assert N % requested == 0
        return int(requested)
    budget = 6 << 20                                     # tap-scratch VMEM budget
    ktap = 9 * (Cout + (Cin if stride != 1 else 0))
    max_b = max(1, budget // (ktap * HW * itemsize))
    cap = N if N < 4 else max(1, N // 2)                 # >=2 grid steps for v7x megacore
    best = 1
    for b in range(1, N + 1):
        if N % b or b > max_b or b > cap:
            continue
        lo = (b * HW) // (stride * stride)
        if lo % 128 and b != N:                          # keep output stores lane-dense
            continue
        best = b
    return best


@functools.partial(jax.jit, static_argnames=("stride", "compute_dtype",
                                              "batch_per_step", "roll_sign"))
def _forward_impl(x_nchw, params, *, stride, compute_dtype, batch_per_step, roll_sign):
    N, Cin, H, W = x_nchw.shape
    Cout = params["w1"].shape[0]
    HW = H * W
    cdt = compute_dtype
    out_dt = x_nchw.dtype

    assert HW % 128 == 0 and Cin % 8 == 0 and Cout % 8 == 0, (
        "TODO(synk): pad channels / spatial for unaligned shapes")
    assert H % stride == 0 and W % stride == 0
    Ho, Wo = H // stride, W // stride

    B = _choose_batch(N, HW, Cout, Cin, stride, jnp.dtype(cdt).itemsize, batch_per_step)
    L = B * HW
    Lout = B * Ho * Wo
    assert Lout % 128 == 0 or B == N, "output lane width must be 128-aligned"

    # --- fold BN into weights/biases and fuse branches (all inside jit) ---
    s1, b1 = _fold_bn(params["bn1"])
    w1f = params["w1"][:, :, 0, 0] * s1[:, None]                                 # (Cout, Cin)
    s2, b2 = _fold_bn(params["bn2"])
    w2f = jnp.transpose(params["w2"] * s2[:, None, None, None],
                        (0, 2, 3, 1)).reshape(Cout, 9 * Cout)                    # (Cout, 9*Cout)

    if stride != 1:                      # 3x3 stride-s downsample: fuse with conv2 along K
        ds_mode = "3x3"
        sd, bd = _fold_bn(params["bnd"])
        wdf = jnp.transpose(params["wd"] * sd[:, None, None, None],
                            (0, 2, 3, 1)).reshape(Cout, 9 * Cin)
        w_first = w1f
        w_second = jnp.concatenate([w2f, wdf], axis=1)                           # (Cout, 9*(Cout+Cin))
        bias = jnp.stack([b1, b2 + bd], axis=1)                                  # (Cout, 2)
        ktap = 9 * (Cout + Cin)
    elif Cin != Cout:                    # 1x1 downsample: fuse with conv1 along M
        ds_mode = "1x1"
        sd, bd = _fold_bn(params["bnd"])
        wdf = params["wd"][:, :, 0, 0] * sd[:, None]
        w_first = jnp.concatenate([w1f, wdf], axis=0)                            # (2*Cout, Cin)
        w_second = w2f
        bias = jnp.stack([b1, b2, bd], axis=1)                                   # (Cout, 3)
        ktap = 9 * Cout
    else:                                # identity residual
        ds_mode = None
        w_first, w_second = w1f, w2f
        bias = jnp.stack([b1, b2], axis=1)                                       # (Cout, 2)
        ktap = 9 * Cout

    w_first = w_first.astype(cdt)
    w_second = w_second.astype(cdt)
    bias = bias.astype(jnp.float32)

    # per-image boundary masks for the 9 taps, tiled across the B images of a block
    q = jnp.arange(HW)
    r, c = q // W, q % W
    mask_local = jnp.stack(
        [((r + dy >= 0) & (r + dy < H) & (c + dx >= 0) & (c + dx < W))
         for dy in (-1, 0, 1) for dx in (-1, 0, 1)]).astype(jnp.float32)         # (9, HW)
    mask = jnp.tile(mask_local, (1, B))                                          # (9, L)

    # activations: NCHW -> (C, N*HW), single cast (bf16 fast path halves input DMA bytes)
    x_t = jnp.transpose(x_nchw.reshape(N, Cin, HW), (1, 0, 2)).reshape(Cin, N * HW)
    x_t = x_t.astype(cdt)

    args = [x_t, w_first, w_second, bias, mask]
    in_specs = [
        pl.BlockSpec((Cin, L), lambda g: (0, g)),
        pl.BlockSpec(w_first.shape, lambda g: (0, 0)),
        pl.BlockSpec(w_second.shape, lambda g: (0, 0)),
        pl.BlockSpec(bias.shape, lambda g: (0, 0)),
        pl.BlockSpec((9, L), lambda g: (0, 0)),
    ]

    if stride != 1:
        # 0/1 selection matrix: picks the strided output positions in-kernel.
        p = jnp.arange(L)
        bimg, qq = p // HW, p % HW
        rr, cc = qq // W, qq % W
        po = bimg * (Ho * Wo) + (rr // stride) * Wo + (cc // stride)
        keep = (rr % stride == 0) & (cc % stride == 0)
        sel = ((jnp.arange(Lout)[None, :] == po[:, None])
               & keep[:, None]).astype(jnp.float32)                              # (L, Lout)
        args.append(sel)
        in_specs.append(pl.BlockSpec((L, Lout), lambda g: (0, 0)))

    kernel = functools.partial(
        _basic_block_kernel, W=W, Cin=Cin, Cout=Cout,
        stride=stride, ds_mode=ds_mode, roll_sign=roll_sign)

    # explicit VMEM budget (generous; matters on v7x's 64 MiB VMEM)
    csz = jnp.dtype(cdt).itemsize
    est = (2 * Cin * L * csz + 2 * Cout * Lout * jnp.dtype(out_dt).itemsize
           + 2 * (w_first.size + w_second.size) * csz
           + 2 * (bias.size + mask.size) * 4
           + (2 * L * Lout * 4 if stride != 1 else 0)
           + ktap * L * csz)
    vmem_limit = int(min(100 << 20, max(16 << 20, 2 * est)))

    out_flat = pl.pallas_call(
        kernel,
        out_shape=jax.ShapeDtypeStruct((Cout, (N * HW) // (stride * stride)), out_dt),
        grid=(N // B,),
        in_specs=in_specs,
        out_specs=pl.BlockSpec((Cout, Lout), lambda g: (0, g)),
        scratch_shapes=[pltpu.VMEM((ktap, L), cdt)],
        compiler_params=pltpu.CompilerParams(
            dimension_semantics=("parallel",),
            vmem_limit_bytes=vmem_limit),
    )(*args)

    return jnp.transpose(out_flat.reshape(Cout, N, Ho, Wo), (1, 0, 2, 3))


def basic_block_forward(x_nchw, params, stride, *, compute_dtype=jnp.bfloat16,
                        batch_per_step=None):
    roll_sign = _roll_sign()   # eager, cached: probe pltpu.roll convention once
    return _forward_impl(x_nchw, params, stride=stride, compute_dtype=compute_dtype,
                         batch_per_step=batch_per_step, roll_sign=roll_sign)


# ------------------------ deterministic parameter init ---------------------- #

def init_params(key, Cin, Cout, stride):
    keys = jax.random.split(key, 6)

    def conv_w(k, shape):  # OIHW, like PyTorch
        fan_in = shape[1] * shape[2] * shape[3]
        return jax.random.normal(k, shape, jnp.float32) / math.sqrt(fan_in)

    def bn_p(k):
        k1, k2, k3, k4 = jax.random.split(k, 4)
        return dict(
            gamma=jax.random.uniform(k1, (Cout,), jnp.float32, 0.5, 1.5),
            beta=jax.random.normal(k2, (Cout,), jnp.float32) * 0.1,
            mean=jax.random.normal(k3, (Cout,), jnp.float32) * 0.1,
            var=jax.random.uniform(k4, (Cout,), jnp.float32, 0.5, 1.5),
        )

    params = dict(
        w1=conv_w(keys[0], (Cout, Cin, 1, 1)),
        bn1=bn_p(keys[1]),
        w2=conv_w(keys[2], (Cout, Cout, 3, 3)),
        bn2=bn_p(keys[3]),
    )
    if stride != 1 or Cin != Cout:
        kd = 3 if stride != 1 else 1
        params["wd"] = conv_w(keys[4], (Cout, Cin, kd, kd))
        params["bnd"] = bn_p(keys[5])
    return params


# ----------------------------- pure-JAX reference --------------------------- #

def ref_forward(x, params, stride):
    def conv(y, w, s, pad):
        return jax.lax.conv_general_dilated(
            y, w, (s, s), pad, dimension_numbers=("NCHW", "OIHW", "NCHW"))

    def bn(y, p):
        g = p["gamma"][None, :, None, None]
        b = p["beta"][None, :, None, None]
        m = p["mean"][None, :, None, None]
        v = p["var"][None, :, None, None]
        return (y - m) / jnp.sqrt(v + BN_EPS) * g + b

    out = jnp.maximum(bn(conv(x, params["w1"], 1, "VALID"), params["bn1"]), 0.0)
    out = bn(conv(out, params["w2"], stride, ((1, 1), (1, 1))), params["bn2"])
    if "wd" in params:
        pad = ((1, 1), (1, 1)) if stride != 1 else "VALID"
        res = bn(conv(x, params["wd"], stride, pad), params["bnd"])
    else:
        res = x
    return jnp.maximum(out + res, 0.0)


# ----------------------------------- main ----------------------------------- #

if __name__ == "__main__":
    key = jax.random.PRNGKey(0)
    kx, kp = jax.random.split(key)

    # main config: Cin != Cout -> 1x1-conv+BN downsample branch, stride 1
    N, Cin, Cout, H, W, stride = 2, 16, 32, 16, 16, 1
    x = jax.random.normal(kx, (N, Cin, H, W), jnp.float32)   # NCHW like PyTorch
    params = init_params(kp, Cin, Cout, stride)
    ref = ref_forward(x, params, stride)

    # exact-math path (f32 end to end)
    out_f32 = jax.block_until_ready(
        basic_block_forward(x, params, stride, compute_dtype=jnp.float32))
    assert out_f32.shape == ref.shape, (out_f32.shape, ref.shape)
    err = float(jnp.max(jnp.abs(out_f32 - ref)))
    assert err < 1e-3, f"f32 path max abs err {err}"

    # fast path: bf16 activations / MXU inputs, f32 accumulation & epilogue
    out_bf16 = jax.block_until_ready(basic_block_forward(x, params, stride))
    err = float(jnp.max(jnp.abs(out_bf16 - ref)))
    assert err < 1e-1, f"bf16 path max abs err {err}"

    # stride-2 config (3x3 stride-2 conv + BN downsample, fused + in-kernel subsample)
    params_s2 = init_params(jax.random.fold_in(kp, 1), Cin, Cout, 2)
    out_s2 = jax.block_until_ready(
        basic_block_forward(x, params_s2, 2, compute_dtype=jnp.float32))
    ref_s2 = ref_forward(x, params_s2, 2)
    assert out_s2.shape == ref_s2.shape, (out_s2.shape, ref_s2.shape)
    err = float(jnp.max(jnp.abs(out_s2 - ref_s2)))
    assert err < 1e-3, f"stride-2 max abs err {err}"

    # identity-residual config (Cin == Cout, stride 1, no downsample)
    x_id = jax.random.normal(jax.random.fold_in(kx, 2), (N, Cout, H, W), jnp.float32)
    params_id = init_params(jax.random.fold_in(kp, 3), Cout, Cout, 1)
    out_id = jax.block_until_ready(
        basic_block_forward(x_id, params_id, 1, compute_dtype=jnp.float32))
    ref_id = ref_forward(x_id, params_id, 1)
    err = float(jnp.max(jnp.abs(out_id - ref_id)))
    assert err < 1e-3, f"identity-residual max abs err {err}"

    print("KERNEL_OK")
</pallas_src>

<mosaic_0001>
module attributes {stable_mosaic.version = 11 : i64} {
  func.func @probe(%arg0: memref<8x128xi32, #tpu.memory_space<vmem>>, %arg1: memref<8x128xi32, #tpu.memory_space<vmem>>) attributes {dimension_semantics = [], scalar_prefetch = 0 : i64, scratch_operands = 0 : i64, tpu.core_type = #tpu.core_type<tc>} {
    %c0 = arith.constant 0 : index
    %c0_0 = arith.constant 0 : index
    %0 = vector.load %arg0[%c0, %c0_0] : memref<8x128xi32, #tpu.memory_space<vmem>>, vector<8x128xi32>
    %c1_i32 = arith.constant 1 : i32
    %1 = tpu.dynamic_rotate %0 by %c1_i32 dim 1 : vector<8x128xi32>, i32 -> vector<8x128xi32>
    %c0_1 = arith.constant 0 : index
    %c0_2 = arith.constant 0 : index
    %2 = vector.load %arg1[%c0_1, %c0_2] : memref<8x128xi32, #tpu.memory_space<vmem>>, vector<8x128xi32>
    tpu.vector_store %arg1[%c0_1, %c0_2], %1 {strides = array<i32>} : memref<8x128xi32, #tpu.memory_space<vmem>>, vector<8x128xi32>,
    return
  }
}

</mosaic_0001>

<llo_original>
// kernel: tpu_custom_call.1
$region0: #{tpu_custom_call.1}
  #allocation0 [shape = 'u32[]', space=smem, size = 0x4, offset = 0x4, fixed_abs, tag = 'smem constant byte address 0x4 - core index']
  #allocation1 [shape = 'u32[144,128]{1,0:T(1,128)}', space=vmem, size = 0x12000, scoped, tag = 'internal scratch']
  %s0 = inlined_call_operand.hbm [shape: s32[8,128], index: 0, kind: input, shape index: {}]
  %s1 = inlined_call_operand.hbm [shape: s32[8,128], index: 1, kind: output, shape index: {}]
  %s2 = sld [smem:[#allocation0]]
  $region18: #{tpu_custom_call.1} parent=0
    _
  %s4 = ssub.s32 1, %s2
  %s5 = scalar_select 0, %s4, %s2
  $region1: #{tpu_custom_call.1} parent=0
    #allocation2 [shape = 'u8[4096]{0}', space=vmem, size = 0x1000, scoped, tag = 'input window, operand 0, single buffered']
    #allocation3 [shape = 's32[1]{0}', space=sflag, size = 0x4, scoped, tag = 'scoped memory for tpu_custom_call.1']
    #allocation4 [shape = 's32[1]{0}', space=sflag, size = 0x4, scoped, tag = 'scoped memory for tpu_custom_call.1']
    #allocation5 [shape = 'u8[4096]{0}', space=vmem, size = 0x1000, scoped, tag = 'output window, operand 0, single buffered']
    %6 = vsyncpa [#allocation3], 0
    %7 = vsyncpa [#allocation4], 0
    // Predicated region
    $region2: #{tpu_custom_call.1} parent=1 // pred_check
      _
    $region3: #{tpu_custom_call.1} parent=1 // pred_check_branch
      %9 = sbr.rel (0) target = $region5
    $region4: #{tpu_custom_call.1} parent=1 // pred_region
      %s11 = ssub.s32 128, 128
      %12 = vsyncadd [#allocation3], %s11
      %s14 = sshll.u32 [#allocation2], 4
      %s15 = int_to_ptr.vmem [resolvable:$true] %s14
      %17 = dma.hbm_to_vmem [thread:$0]  %s0, 128, %s15, [#allocation3]
    $region5: #{tpu_custom_call.1} parent=1 // pred_fallthru
      _
    // Predicated region
    $region6: #{tpu_custom_call.1} parent=1 // pred_check
      _
    $region7: #{tpu_custom_call.1} parent=1 // pred_check_branch
      %19 = sbr.rel (0) target = $region9
    $region8: #{tpu_custom_call.1} parent=1 // pred_region
      %20 = dma.done [#allocation3], 128
    $region9: #{tpu_custom_call.1} parent=1 // pred_fallthru
      _
    %v21 = vld [vmem:[#allocation2] sm:$0xff]
    %22 = vrot.lane.b32.xlu0 %v21, 1
    %v23 = vpop.permute.xlu0 %22
    %24 = vst [vmem:[#allocation5] sm:$0xff] %v23
    // Predicated region
    $region10: #{tpu_custom_call.1} parent=1 // pred_check
      _
    $region11: #{tpu_custom_call.1} parent=1 // pred_check_branch
      %26 = sbr.rel (0) target = $region13
    $region12: #{tpu_custom_call.1} parent=1 // pred_region
      %s28 = ssub.s32 128, 128
      %29 = vsyncadd [#allocation4], %s28
      %s31 = sshll.u32 [#allocation5], 4
      %s32 = int_to_ptr.vmem [resolvable:$true] %s31
      %34 = dma.vmem_to_hbm [thread:$0]  %s32, 128, %s1, [#allocation4]
    $region13: #{tpu_custom_call.1} parent=1 // pred_fallthru
      _
    // Predicated region
    $region14: #{tpu_custom_call.1} parent=1 // pred_check
      _
    $region15: #{tpu_custom_call.1} parent=1 // pred_check_branch
      %36 = sbr.rel (0) target = $region17
    $region16: #{tpu_custom_call.1} parent=1 // pred_region
      %37 = dma.done [#allocation4], 128
    $region17: #{tpu_custom_call.1} parent=1 // pred_fallthru
      _
    %38 = vsyncpa [#allocation3], 1
    %39 = vsyncpa [#allocation4], 1

</llo_original>
